<compile_context>
chip_gen: v6e
topology: v6e:2x2x1
jax: 0.10.0
libtpu: 0.0.40
codegen_flags: <defaults>
</compile_context>

<pallas_src>
import jax
import jax.numpy as jnp
from jax.experimental import pallas as pl
from jax.experimental.pallas import tpu as pltpu

LANE = 128     # lane width (last dim of a vreg tile)
SUBLANE = 8    # f32 sublane width (second-to-last dim)


def _round_up(n, m):
    return ((n + m - 1) // m) * m


def _tile_padded_bytes(rows, cols, itemsize=4):
    """Bytes one (rows, cols) f32 array occupies in VMEM after (8,128) tiling."""
    return _round_up(max(rows, 1), SUBLANE) * _round_up(max(cols, 1), LANE) * itemsize


def mlp_kernel(x_ref, w1_ref, b1_ref, w2_ref, b2_ref, w3_ref, b3_ref, o_ref):
    # layer_1 + ReLU   (MXU matmul, f32 accumulate; bias/ReLU on the VPU)
    h1 = jnp.dot(x_ref[...], w1_ref[...], preferred_element_type=jnp.float32)
    h1 = jnp.maximum(h1 + b1_ref[...], 0.0)
    # layer_2 + ReLU
    h2 = jnp.dot(h1, w2_ref[...], preferred_element_type=jnp.float32)
    h2 = jnp.maximum(h2 + b2_ref[...], 0.0)
    # layer_3 + Sigmoid (exp lands on the EUP slot)
    z = jnp.dot(h2, w3_ref[...], preferred_element_type=jnp.float32) + b3_ref[...]
    o_ref[...] = jax.nn.sigmoid(z).astype(o_ref.dtype)


def neural_network_forward(x, params, *, tile_b=512):
    """Forward pass of the 3-layer MLP in one Pallas kernel.

    x: (batch, input_dim) f32.  params: (w1, b1, w2, b2, w3, b3) with weights
    stored (in_features, out_features) and biases (1, out_features).
    """
    w1, b1, w2, b2, w3, b3 = params
    batch, in_dim = x.shape
    h1_dim, h2_dim, out_dim = w1.shape[1], w2.shape[1], w3.shape[1]

    # --- batch tile: multiple of 8 sublanes, <= tile_b, and small enough that
    #     large batches give >=4 grid steps (pipelining + v7x megacore). ---
    tb = _round_up(max(1, min(tile_b, pl.cdiv(batch, 4))), SUBLANE)
    tb = min(tb, _round_up(batch, SUBLANE))
    grid = (pl.cdiv(batch, tb),)   # last block may be partial; OOB rows dropped

    # Weights / biases are VMEM-resident across batch tiles (constant index_map).
    def resident(shape):
        return pl.BlockSpec(shape, lambda i: (0, 0))

    # --- right-sized VMEM request (tile-padded footprint + headroom), capped
    #     well below v7x's 64 MiB physical VMEM. ---
    param_bytes = sum(_tile_padded_bytes(*a.shape)
                      for a in (w1, b1, w2, b2, w3, b3))
    io_bytes = 2 * (_tile_padded_bytes(tb, in_dim) + _tile_padded_bytes(tb, out_dim))
    interm_bytes = 4 * _tile_padded_bytes(tb, max(h1_dim, h2_dim, out_dim))
    vmem_need = 2 * param_bytes + io_bytes + interm_bytes
    vmem_limit = int(min(max(vmem_need + (8 << 20), 16 << 20), 48 << 20))

    cost = pl.CostEstimate(
        flops=2 * batch * (in_dim * h1_dim + h1_dim * h2_dim + h2_dim * out_dim),
        transcendentals=batch * out_dim,
        bytes_accessed=4 * (batch * in_dim + batch * out_dim
                            + w1.size + b1.size + w2.size + b2.size
                            + w3.size + b3.size),
    )

    return pl.pallas_call(
        mlp_kernel,
        out_shape=jax.ShapeDtypeStruct((batch, out_dim), jnp.float32),
        grid_spec=pltpu.PrefetchScalarGridSpec(
            num_scalar_prefetch=0,
            grid=grid,
            in_specs=[
                pl.BlockSpec((tb, in_dim), lambda i: (i, 0)),      # x batch tile
                resident((in_dim, h1_dim)), resident((1, h1_dim)),  # layer_1
                resident((h1_dim, h2_dim)), resident((1, h2_dim)),  # layer_2
                resident((h2_dim, out_dim)), resident((1, out_dim)),  # layer_3
            ],
            out_specs=pl.BlockSpec((tb, out_dim), lambda i: (i, 0)),
        ),
        compiler_params=pltpu.CompilerParams(
            dimension_semantics=("parallel",),   # megacore sharding on v7x
            vmem_limit_bytes=vmem_limit,
        ),
        cost_estimate=cost,
    )(x, w1, b1, w2, b2, w3, b3)


def init_params(key, input_dim, hidden_dim, output_dim):
    """Deterministic init mirroring nn.Linear shapes (stored as (in, out))."""
    dims = [(input_dim, hidden_dim[0]),
            (hidden_dim[0], hidden_dim[1]),
            (hidden_dim[1], output_dim)]
    params = []
    for (fan_in, fan_out) in dims:
        key, kw, kb = jax.random.split(key, 3)
        bound = 1.0 / jnp.sqrt(fan_in)
        w = jax.random.uniform(kw, (fan_in, fan_out), jnp.float32, -bound, bound)
        b = jax.random.uniform(kb, (1, fan_out), jnp.float32, -bound, bound)
        params += [w, b]
    return tuple(params)


def reference_forward(x, params):
    w1, b1, w2, b2, w3, b3 = params
    h1 = jnp.maximum(x @ w1 + b1, 0.0)
    h2 = jnp.maximum(h1 @ w2 + b2, 0.0)
    return jax.nn.sigmoid(h2 @ w3 + b3)


if __name__ == "__main__":
    key = jax.random.PRNGKey(0)
    batch, input_dim, hidden_dim, output_dim = 8, 16, (32, 24), 4

    key, kx = jax.random.split(key)
    x = jax.random.normal(kx, (batch, input_dim), jnp.float32)
    params = init_params(key, input_dim, hidden_dim, output_dim)

    out = neural_network_forward(x, params)
    jax.block_until_ready(out)

    ref = reference_forward(x, params)
    assert out.shape == (batch, output_dim)
    assert jnp.allclose(out, ref, atol=1e-5, rtol=1e-5)

    print("KERNEL_OK")
</pallas_src>

<mosaic_0001>
module attributes {stable_mosaic.version = 11 : i64} {
  func.func @mlp_kernel(%arg0: i32, %arg1: memref<8x16xf32, #tpu.memory_space<vmem>>, %arg2: memref<16x32xf32, #tpu.memory_space<vmem>>, %arg3: memref<1x32xf32, #tpu.memory_space<vmem>>, %arg4: memref<32x24xf32, #tpu.memory_space<vmem>>, %arg5: memref<1x24xf32, #tpu.memory_space<vmem>>, %arg6: memref<24x4xf32, #tpu.memory_space<vmem>>, %arg7: memref<1x4xf32, #tpu.memory_space<vmem>>, %arg8: memref<8x4xf32, #tpu.memory_space<vmem>>) attributes {dimension_semantics = [#tpu.dimension_semantics<parallel>], iteration_bounds = array<i64: 1>, scalar_prefetch = 0 : i64, scratch_operands = 0 : i64, tpu.core_type = #tpu.core_type<tc>, window_params = [{transform_indices = @transform_0, window_bounds = array<i64: 8, 16>}, {pipeline_mode = #tpu.pipeline_mode<synchronous>, transform_indices = @transform_1, window_bounds = array<i64: 16, 32>}, {pipeline_mode = #tpu.pipeline_mode<synchronous>, transform_indices = @transform_2, window_bounds = array<i64: 1, 32>}, {pipeline_mode = #tpu.pipeline_mode<synchronous>, transform_indices = @transform_3, window_bounds = array<i64: 32, 24>}, {pipeline_mode = #tpu.pipeline_mode<synchronous>, transform_indices = @transform_4, window_bounds = array<i64: 1, 24>}, {pipeline_mode = #tpu.pipeline_mode<synchronous>, transform_indices = @transform_5, window_bounds = array<i64: 24, 4>}, {pipeline_mode = #tpu.pipeline_mode<synchronous>, transform_indices = @transform_6, window_bounds = array<i64: 1, 4>}, {transform_indices = @transform_7, window_bounds = array<i64: 8, 4>}]} {
    %c0 = arith.constant 0 : index
    %c0_0 = arith.constant 0 : index
    %0 = vector.load %arg1[%c0, %c0_0] : memref<8x16xf32, #tpu.memory_space<vmem>>, vector<8x16xf32>
    %c0_1 = arith.constant 0 : index
    %c0_2 = arith.constant 0 : index
    %1 = vector.load %arg2[%c0_1, %c0_2] : memref<16x32xf32, #tpu.memory_space<vmem>>, vector<16x32xf32>
    %cst = arith.constant dense<0.000000e+00> : vector<8x32xf32>
    %2 = tpu.matmul %0, %1, %cst {dimension_numbers = #tpu.dot_dimension_numbers<[1], [0], [0], [1], [0, 0, 1, 1], [], []>} : vector<8x16xf32>, vector<16x32xf32>, vector<8x32xf32> -> vector<8x32xf32>
    %c0_3 = arith.constant 0 : index
    %c0_4 = arith.constant 0 : index
    %3 = vector.load %arg3[%c0_3, %c0_4] : memref<1x32xf32, #tpu.memory_space<vmem>>, vector<1x32xf32>
    %4 = vector.broadcast %3 : vector<1x32xf32> to vector<8x32xf32>
    %5 = arith.addf %2, %4 : vector<8x32xf32>
    %cst_5 = arith.constant 0.000000e+00 : f32
    %6 = vector.broadcast %cst_5 : f32 to vector<8x32xf32>
    %7 = arith.maximumf %5, %6 : vector<8x32xf32>
    %c0_6 = arith.constant 0 : index
    %c0_7 = arith.constant 0 : index
    %8 = vector.load %arg4[%c0_6, %c0_7] : memref<32x24xf32, #tpu.memory_space<vmem>>, vector<32x24xf32>
    %cst_8 = arith.constant dense<0.000000e+00> : vector<8x24xf32>
    %9 = tpu.matmul %7, %8, %cst_8 {dimension_numbers = #tpu.dot_dimension_numbers<[1], [0], [0], [1], [0, 0, 1, 1], [], []>} : vector<8x32xf32>, vector<32x24xf32>, vector<8x24xf32> -> vector<8x24xf32>
    %c0_9 = arith.constant 0 : index
    %c0_10 = arith.constant 0 : index
    %10 = vector.load %arg5[%c0_9, %c0_10] : memref<1x24xf32, #tpu.memory_space<vmem>>, vector<1x24xf32>
    %11 = vector.broadcast %10 : vector<1x24xf32> to vector<8x24xf32>
    %12 = arith.addf %9, %11 : vector<8x24xf32>
    %cst_11 = arith.constant 0.000000e+00 : f32
    %13 = vector.broadcast %cst_11 : f32 to vector<8x24xf32>
    %14 = arith.maximumf %12, %13 : vector<8x24xf32>
    %c0_12 = arith.constant 0 : index
    %c0_13 = arith.constant 0 : index
    %15 = vector.load %arg6[%c0_12, %c0_13] : memref<24x4xf32, #tpu.memory_space<vmem>>, vector<24x4xf32>
    %cst_14 = arith.constant dense<0.000000e+00> : vector<8x4xf32>
    %16 = tpu.matmul %14, %15, %cst_14 {dimension_numbers = #tpu.dot_dimension_numbers<[1], [0], [0], [1], [0, 0, 1, 1], [], []>} : vector<8x24xf32>, vector<24x4xf32>, vector<8x4xf32> -> vector<8x4xf32>
    %c0_15 = arith.constant 0 : index
    %c0_16 = arith.constant 0 : index
    %17 = vector.load %arg7[%c0_15, %c0_16] : memref<1x4xf32, #tpu.memory_space<vmem>>, vector<1x4xf32>
    %18 = vector.broadcast %17 : vector<1x4xf32> to vector<8x4xf32>
    %19 = arith.addf %16, %18 : vector<8x4xf32>
    %20 = arith.negf %19 : vector<8x4xf32>
    %21 = math.exp %20 : vector<8x4xf32>
    %cst_17 = arith.constant 1.000000e+00 : f32
    %22 = vector.broadcast %cst_17 : f32 to vector<8x4xf32>
    %23 = arith.addf %22, %21 : vector<8x4xf32>
    %24 = arith.divf %22, %23 : vector<8x4xf32>
    %c0_18 = arith.constant 0 : index
    %c0_19 = arith.constant 0 : index
    %25 = vector.load %arg8[%c0_18, %c0_19] : memref<8x4xf32, #tpu.memory_space<vmem>>, vector<8x4xf32>
    tpu.vector_store %arg8[%c0_18, %c0_19], %24 {strides = array<i32>} : memref<8x4xf32, #tpu.memory_space<vmem>>, vector<8x4xf32>,
    return
  }
  func.func @transform_0(%arg0: i32) -> (i32, i32) {
    %c0_i32 = arith.constant 0 : i32
    %c0_i32_0 = arith.constant 0 : i32
    return %arg0, %c0_i32 : i32, i32
  }
  func.func @transform_1(%arg0: i32) -> (i32, i32) {
    %c0_i32 = arith.constant 0 : i32
    %c0_i32_0 = arith.constant 0 : i32
    %c0_i32_1 = arith.constant 0 : i32
    return %c0_i32, %c0_i32_0 : i32, i32
  }
  func.func @transform_2(%arg0: i32) -> (i32, i32) {
    %c0_i32 = arith.constant 0 : i32
    %c0_i32_0 = arith.constant 0 : i32
    %c0_i32_1 = arith.constant 0 : i32
    return %c0_i32, %c0_i32_0 : i32, i32
  }
  func.func @transform_3(%arg0: i32) -> (i32, i32) {
    %c0_i32 = arith.constant 0 : i32
    %c0_i32_0 = arith.constant 0 : i32
    %c0_i32_1 = arith.constant 0 : i32
    return %c0_i32, %c0_i32_0 : i32, i32
  }
  func.func @transform_4(%arg0: i32) -> (i32, i32) {
    %c0_i32 = arith.constant 0 : i32
    %c0_i32_0 = arith.constant 0 : i32
    %c0_i32_1 = arith.constant 0 : i32
    return %c0_i32, %c0_i32_0 : i32, i32
  }
  func.func @transform_5(%arg0: i32) -> (i32, i32) {
    %c0_i32 = arith.constant 0 : i32
    %c0_i32_0 = arith.constant 0 : i32
    %c0_i32_1 = arith.constant 0 : i32
    return %c0_i32, %c0_i32_0 : i32, i32
  }
  func.func @transform_6(%arg0: i32) -> (i32, i32) {
    %c0_i32 = arith.constant 0 : i32
    %c0_i32_0 = arith.constant 0 : i32
    %c0_i32_1 = arith.constant 0 : i32
    return %c0_i32, %c0_i32_0 : i32, i32
  }
  func.func @transform_7(%arg0: i32) -> (i32, i32) {
    %c0_i32 = arith.constant 0 : i32
    %c0_i32_0 = arith.constant 0 : i32
    return %arg0, %c0_i32 : i32, i32
  }
}

</mosaic_0001>

<llo_original>
// kernel: tpu_custom_call.1
$region0: #{tpu_custom_call.1}
  #allocation0 [shape = 'u32[]', space=smem, size = 0x4, offset = 0x4, fixed_abs, tag = 'smem constant byte address 0x4 - core index']
  #allocation1 [shape = 'u32[144,128]{1,0:T(1,128)}', space=vmem, size = 0x12000, scoped, tag = 'internal scratch']
  %s0 = inlined_call_operand.vmem [shape: f32[8,16], index: 0, kind: input, shape index: {}]
  %s1 = inlined_call_operand.vmem [shape: f32[16,32], index: 1, kind: input, shape index: {}]
  %s2 = inlined_call_operand.vmem [shape: f32[1,32], index: 2, kind: input, shape index: {}]
  %s3 = inlined_call_operand.vmem [shape: f32[32,24], index: 3, kind: input, shape index: {}]
  %s4 = inlined_call_operand.vmem [shape: f32[1,24], index: 4, kind: input, shape index: {}]
  %s5 = inlined_call_operand.vmem [shape: f32[24,4], index: 5, kind: input, shape index: {}]
  %s6 = inlined_call_operand.vmem [shape: f32[1,4], index: 6, kind: input, shape index: {}]
  %s7 = inlined_call_operand.vmem [shape: f32[8,4], index: 7, kind: output, shape index: {}]
  %s8 = sld [smem:[#allocation0]]
  $region38: #{tpu_custom_call.1} parent=0
    _
  %s10 = ssub.s32 1, %s8
  %s11 = scalar_select 0, %s10, %s8
  // Predicated region
  $region2: #{tpu_custom_call.1} parent=0 // pred_check
    _
  $region3: #{tpu_custom_call.1} parent=0 // pred_check_branch
    %13 = sbr.rel (0) target = $region5
  $region4: #{tpu_custom_call.1} parent=0 // pred_region
    _
  $region5: #{tpu_custom_call.1} parent=0 // pred_fallthru
    _
  // Predicated region
  $region6: #{tpu_custom_call.1} parent=0 // pred_check
    _
  $region7: #{tpu_custom_call.1} parent=0 // pred_check_branch
    %15 = sbr.rel (0) target = $region9
  $region8: #{tpu_custom_call.1} parent=0 // pred_region
    _
  $region9: #{tpu_custom_call.1} parent=0 // pred_fallthru
    _
  // Predicated region
  $region10: #{tpu_custom_call.1} parent=0 // pred_check
    _
  $region11: #{tpu_custom_call.1} parent=0 // pred_check_branch
    %17 = sbr.rel (0) target = $region13
  $region12: #{tpu_custom_call.1} parent=0 // pred_region
    _
  $region13: #{tpu_custom_call.1} parent=0 // pred_fallthru
    _
  // Predicated region
  $region14: #{tpu_custom_call.1} parent=0 // pred_check
    _
  $region15: #{tpu_custom_call.1} parent=0 // pred_check_branch
    %19 = sbr.rel (0) target = $region17
  $region16: #{tpu_custom_call.1} parent=0 // pred_region
    _
  $region17: #{tpu_custom_call.1} parent=0 // pred_fallthru
    _
  // Predicated region
  $region18: #{tpu_custom_call.1} parent=0 // pred_check
    _
  $region19: #{tpu_custom_call.1} parent=0 // pred_check_branch
    %21 = sbr.rel (0) target = $region21
  $region20: #{tpu_custom_call.1} parent=0 // pred_region
    _
  $region21: #{tpu_custom_call.1} parent=0 // pred_fallthru
    _
  // Predicated region
  $region22: #{tpu_custom_call.1} parent=0 // pred_check
    _
  $region23: #{tpu_custom_call.1} parent=0 // pred_check_branch
    %23 = sbr.rel (0) target = $region25
  $region24: #{tpu_custom_call.1} parent=0 // pred_region
    _
  $region25: #{tpu_custom_call.1} parent=0 // pred_fallthru
    _
  // Predicated region
  $region26: #{tpu_custom_call.1} parent=0 // pred_check
    _
  $region27: #{tpu_custom_call.1} parent=0 // pred_check_branch
    %25 = sbr.rel (0) target = $region29
  $region28: #{tpu_custom_call.1} parent=0 // pred_region
    _
  $region29: #{tpu_custom_call.1} parent=0 // pred_fallthru
    _
  %v26 = vld [vmem:[%s0] sm:$0xff]
  %v27 = vld [vmem:[%s1] sm:$0xff]
  %v28 = vld [vmem:[%s1 + $0x8] sm:$0xff]
  %v29 = vld [vmem:[%s2] sm:$0x1]
  %v31 = vlaneseq
  %v32 = vshrl.u32 %v31, 7
  %v33 = vsub.s32 0, %v32
  %v34 = vrot.slane %v29, %v33
  %vm36 = vcmask 130048
  %v38 = vsel %vm36, %v26, 0
  %40 = vmatprep.subr.mxu0 0.0
  %41 = vmatpush1.msra.mxu0 0.0
  %42 = vmatprep.subr.mxu0 0.0
  %43 = vmatpush1.msra.mxu0 0.0
  %44 = vmatprep.subr.mxu0 0.0
  %45 = vmatpush1.msra.mxu0 0.0
  %46 = vmatprep.subr.mxu0 0.0
  %47 = vmatpush1.msra.mxu0 0.0
  %48 = vmatprep.subr.mxu0 0.0
  %49 = vmatpush1.msra.mxu0 0.0
  %50 = vmatprep.subr.mxu0 0.0
  %51 = vmatpush1.msra.mxu0 0.0
  %52 = vmatprep.subr.mxu0 0.0
  %53 = vmatpush1.msra.mxu0 0.0
  %54 = vmatprep.subr.mxu0 0.0
  %55 = vmatpush1.msra.mxu0 0.0
  %56 = vmatprep.subr.mxu0 0.0
  %57 = vmatpush1.msra.mxu0 0.0
  %58 = vmatprep.subr.mxu0 0.0
  %59 = vmatpush1.msra.mxu0 0.0
  %60 = vmatprep.subr.mxu0 0.0
  %61 = vmatpush1.msra.mxu0 0.0
  %62 = vmatprep.subr.mxu0 0.0
  %63 = vmatpush1.msra.mxu0 0.0
  %64 = vmatprep.subr.mxu0 0.0
  %65 = vmatpush1.msra.mxu0 0.0
  %66 = vmatprep.subr.mxu0 0.0
  %67 = vmatpush1.msra.mxu0 0.0
  %68 = vmatprep.subr.mxu0 0.0
  %69 = vmatpush1.msra.mxu0 %v28
  %70 = vmatprep.subr.mxu0 0.0
  %71 = vmatpush1.msra.mxu0 %v27
  %72 = vmatprep.subr.mxu0 0.0
  %73 = vmatpush2.msra.mxu0 0.0
  %74 = vmatprep.subr.mxu0 0.0
  %75 = vmatpush2.msra.mxu0 0.0
  %76 = vmatprep.subr.mxu0 0.0
  %77 = vmatpush2.msra.mxu0 0.0
  %78 = vmatprep.subr.mxu0 0.0
  %79 = vmatpush2.msra.mxu0 0.0
  %80 = vmatprep.subr.mxu0 0.0
  %81 = vmatpush2.msra.mxu0 0.0
  %82 = vmatprep.subr.mxu0 0.0
  %83 = vmatpush2.msra.mxu0 0.0
  %84 = vmatprep.subr.mxu0 0.0
  %85 = vmatpush2.msra.mxu0 0.0
  %86 = vmatprep.subr.mxu0 0.0
  %87 = vmatpush2.msra.mxu0 0.0
  %88 = vmatprep.subr.mxu0 0.0
  %89 = vmatpush2.msra.mxu0 0.0
  %90 = vmatprep.subr.mxu0 0.0
  %91 = vmatpush2.msra.mxu0 0.0
  %92 = vmatprep.subr.mxu0 0.0
  %93 = vmatpush2.msra.mxu0 0.0
  %94 = vmatprep.subr.mxu0 0.0
  %95 = vmatpush2.msra.mxu0 0.0
  %96 = vmatprep.subr.mxu0 0.0
  %97 = vmatpush2.msra.mxu0 0.0
  %98 = vmatprep.subr.mxu0 0.0
  %99 = vmatpush2.msra.mxu0 0.0
  %100 = vmatprep.subr.mxu0 0.0
  %101 = vmatpush2.msra.mxu0 0.0
  %102 = vmatprep.subr.mxu0 0.0
  %103 = vmatpush2.msra.mxu0 0.0
  %104 = vmatprep.mubr.f32.mxu0 0.0
  %105 = vmatmul.mubr.f32.gmra.mxu0 %v38
  %v106 = vpop.f32.mrf.mxu0
  %v107 = vadd.f32 %v34, %v106
  %v108 = vpop.f32.mrf.mxu0
  %109 = vdwg.mxu0
  %v110 = vmax.f32 %v107, 0.0
  %v111 = vld [vmem:[%s3] sm:$0xff]
  %v112 = vld [vmem:[%s3 + $0x8] sm:$0xff]
  %v113 = vld [vmem:[%s3 + $0x10] sm:$0xff]
  %v114 = vld [vmem:[%s3 + $0x18] sm:$0xff]
  %v115 = vld [vmem:[%s4] sm:$0x1]
  %v117 = vlaneseq
  %v118 = vshrl.u32 %v117, 7
  %v119 = vsub.s32 0, %v118
  %v120 = vrot.slane %v115, %v119
  %vm122 = vcmask 261120
  %v124 = vsel %vm122, %v110, 0
  %126 = vmatprep.subr.mxu0 0.0
  %127 = vmatpush1.msra.mxu0 0.0
  %128 = vmatprep.subr.mxu0 0.0
  %129 = vmatpush1.msra.mxu0 0.0
  %130 = vmatprep.subr.mxu0 0.0
  %131 = vmatpush1.msra.mxu0 0.0
  %132 = vmatprep.subr.mxu0 0.0
  %133 = vmatpush1.msra.mxu0 0.0
  %134 = vmatprep.subr.mxu0 0.0
  %135 = vmatpush1.msra.mxu0 0.0
  %136 = vmatprep.subr.mxu0 0.0
  %137 = vmatpush1.msra.mxu0 0.0
  %138 = vmatprep.subr.mxu0 0.0
  %139 = vmatpush1.msra.mxu0 0.0
  %140 = vmatprep.subr.mxu0 0.0
  %141 = vmatpush1.msra.mxu0 0.0
  %142 = vmatprep.subr.mxu0 0.0
  %143 = vmatpush1.msra.mxu0 0.0
  %144 = vmatprep.subr.mxu0 0.0
  %145 = vmatpush1.msra.mxu0 0.0
  %146 = vmatprep.subr.mxu0 0.0
  %147 = vmatpush1.msra.mxu0 0.0
  %148 = vmatprep.subr.mxu0 0.0
  %149 = vmatpush1.msra.mxu0 0.0
  %150 = vmatprep.subr.mxu0 0.0
  %151 = vmatpush1.msra.mxu0 %v114
  %152 = vmatprep.subr.mxu0 0.0
  %153 = vmatpush1.msra.mxu0 %v113
  %154 = vmatprep.subr.mxu0 0.0
  %155 = vmatpush1.msra.mxu0 %v112
  %156 = vmatprep.subr.mxu0 0.0
  %157 = vmatpush1.msra.mxu0 %v111
  %158 = vmatprep.subr.mxu0 0.0
  %159 = vmatpush2.msra.mxu0 0.0
  %160 = vmatprep.subr.mxu0 0.0
  %161 = vmatpush2.msra.mxu0 0.0
  %162 = vmatprep.subr.mxu0 0.0
  %163 = vmatpush2.msra.mxu0 0.0
  %164 = vmatprep.subr.mxu0 0.0
  %165 = vmatpush2.msra.mxu0 0.0
  %166 = vmatprep.subr.mxu0 0.0
  %167 = vmatpush2.msra.mxu0 0.0
  %168 = vmatprep.subr.mxu0 0.0
  %169 = vmatpush2.msra.mxu0 0.0
  %170 = vmatprep.subr.mxu0 0.0
  %171 = vmatpush2.msra.mxu0 0.0
  %172 = vmatprep.subr.mxu0 0.0
  %173 = vmatpush2.msra.mxu0 0.0
  %174 = vmatprep.subr.mxu0 0.0
  %175 = vmatpush2.msra.mxu0 0.0
  %176 = vmatprep.subr.mxu0 0.0
  %177 = vmatpush2.msra.mxu0 0.0
  %178 = vmatprep.subr.mxu0 0.0
  %179 = vmatpush2.msra.mxu0 0.0
  %180 = vmatprep.subr.mxu0 0.0
  %181 = vmatpush2.msra.mxu0 0.0
  %182 = vmatprep.subr.mxu0 0.0
  %183 = vmatpush2.msra.mxu0 0.0
  %184 = vmatprep.subr.mxu0 0.0
  %185 = vmatpush2.msra.mxu0 0.0
  %186 = vmatprep.subr.mxu0 0.0
  %187 = vmatpush2.msra.mxu0 0.0
  %188 = vmatprep.subr.mxu0 0.0
  %189 = vmatpush2.msra.mxu0 0.0
  %190 = vmatprep.mubr.f32.mxu0 0.0
  %191 = vmatmul.mubr.f32.gmra.mxu0 %v124
  %v192 = vpop.f32.mrf.mxu0
  %v193 = vadd.f32 %v120, %v192
  %v194 = vpop.f32.mrf.mxu0
  %195 = vdwg.mxu0
  %v196 = vmax.f32 %v193, 0.0
  %v197 = vld [vmem:[%s5] sm:$0xff]
  %v198 = vld [vmem:[%s5 + $0x8] sm:$0xff]
  %v199 = vld [vmem:[%s5 + $0x10] sm:$0xff]
  %v200 = vld [vmem:[%s6] sm:$0x1]
  %v202 = vlaneseq
  %v203 = vshrl.u32 %v202, 7
  %v204 = vsub.s32 0, %v203
  %v205 = vrot.slane %v200, %v204
  %vm207 = vcmask 195584
  %v209 = vsel %vm207, %v196, 0
  %211 = vmatprep.subr.mxu0 0.0
  %212 = vmatpush1.msra.mxu0 0.0
  %213 = vmatprep.subr.mxu0 0.0
  %214 = vmatpush1.msra.mxu0 0.0
  %215 = vmatprep.subr.mxu0 0.0
  %216 = vmatpush1.msra.mxu0 0.0
  %217 = vmatprep.subr.mxu0 0.0
  %218 = vmatpush1.msra.mxu0 0.0
  %219 = vmatprep.subr.mxu0 0.0
  %220 = vmatpush1.msra.mxu0 0.0
  %221 = vmatprep.subr.mxu0 0.0
  %222 = vmatpush1.msra.mxu0 0.0
  %223 = vmatprep.subr.mxu0 0.0
  %224 = vmatpush1.msra.mxu0 0.0
  %225 = vmatprep.subr.mxu0 0.0
  %226 = vmatpush1.msra.mxu0 0.0
  %227 = vmatprep.subr.mxu0 0.0
  %228 = vmatpush1.msra.mxu0 0.0
  %229 = vmatprep.subr.mxu0 0.0
  %230 = vmatpush1.msra.mxu0 0.0
  %231 = vmatprep.subr.mxu0 0.0
  %232 = vmatpush1.msra.mxu0 0.0
  %233 = vmatprep.subr.mxu0 0.0
  %234 = vmatpush1.msra.mxu0 0.0
  %235 = vmatprep.subr.mxu0 0.0
  %236 = vmatpush1.msra.mxu0 0.0
  %237 = vmatprep.subr.mxu0 0.0
  %238 = vmatpush1.msra.mxu0 %v199
  %239 = vmatprep.subr.mxu0 0.0
  %240 = vmatpush1.msra.mxu0 %v198
  %241 = vmatprep.subr.mxu0 0.0
  %242 = vmatpush1.msra.mxu0 %v197
  %243 = vmatprep.subr.mxu0 0.0
  %244 = vmatpush2.msra.mxu0 0.0
  %245 = vmatprep.subr.mxu0 0.0
  %246 = vmatpush2.msra.mxu0 0.0
  %247 = vmatprep.subr.mxu0 0.0
  %248 = vmatpush2.msra.mxu0 0.0
  %249 = vmatprep.subr.mxu0 0.0
  %250 = vmatpush2.msra.mxu0 0.0
  %251 = vmatprep.subr.mxu0 0.0
  %252 = vmatpush2.msra.mxu0 0.0
  %253 = vmatprep.subr.mxu0 0.0
  %254 = vmatpush2.msra.mxu0 0.0
  %255 = vmatprep.subr.mxu0 0.0
  %256 = vmatpush2.msra.mxu0 0.0
  %257 = vmatprep.subr.mxu0 0.0
  %258 = vmatpush2.msra.mxu0 0.0
  %259 = vmatprep.subr.mxu0 0.0
  %260 = vmatpush2.msra.mxu0 0.0
  %261 = vmatprep.subr.mxu0 0.0
  %262 = vmatpush2.msra.mxu0 0.0
  %263 = vmatprep.subr.mxu0 0.0
  %264 = vmatpush2.msra.mxu0 0.0
  %265 = vmatprep.subr.mxu0 0.0
  %266 = vmatpush2.msra.mxu0 0.0
  %267 = vmatprep.subr.mxu0 0.0
  %268 = vmatpush2.msra.mxu0 0.0
  %269 = vmatprep.subr.mxu0 0.0
  %270 = vmatpush2.msra.mxu0 0.0
  %271 = vmatprep.subr.mxu0 0.0
  %272 = vmatpush2.msra.mxu0 0.0
  %273 = vmatprep.subr.mxu0 0.0
  %274 = vmatpush2.msra.mxu0 0.0
  %275 = vmatprep.mubr.f32.mxu0 0.0
  %276 = vmatmul.mubr.f32.gmra.mxu0 %v209
  %v277 = vpop.f32.mrf.mxu0
  %v278 = vadd.f32 %v205, %v277
  %v279 = vpop.f32.mrf.mxu0
  %280 = vdwg.mxu0
  %v281 = vxor.u32 %v278, 2147483648
  %v282 = vmul.f32 %v281, 1.442695
  %v283 = vpow.pop %v282
  %v284 = vadd.f32 %v283, 1.0
  %v285 = vrcp.pop %v284
  %v286 = vmul.f32 1.0, %v285
  %vm287 = vcmask 31744
  %288 = vst.msk [vmem:[%s7] sm:$0xff] %vm287, %v286
  // Predicated region
  $region30: #{tpu_custom_call.1} parent=0 // pred_check
    _
  $region31: #{tpu_custom_call.1} parent=0 // pred_check_branch
    %290 = sbr.rel (0) target = $region33
  $region32: #{tpu_custom_call.1} parent=0 // pred_region
    _
  $region33: #{tpu_custom_call.1} parent=0 // pred_fallthru
    _
  // Predicated region
  $region34: #{tpu_custom_call.1} parent=0 // pred_check
    _
  $region35: #{tpu_custom_call.1} parent=0 // pred_check_branch
    %292 = sbr.rel (0) target = $region37
  $region36: #{tpu_custom_call.1} parent=0 // pred_region
    _
  $region37: #{tpu_custom_call.1} parent=0 // pred_fallthru
    _

</llo_original>
